<compile_context>
chip_gen: v7x
topology: tpu7x:2x2x1
jax: 0.10.0
libtpu: 0.0.40
codegen_flags: <defaults>
</compile_context>

<pallas_src>
import functools

import jax
import jax.numpy as jnp
from jax import lax
from jax.experimental import pallas as pl
from jax.experimental.pallas import tpu as pltpu

N_OUT = 2  # nn.Linear(..., 2)


def _linear_kernel(x_ref, w_ref, o_ref):
    """One K-tile of y = x @ W^T, accumulated in-place into the resident output."""
    @pl.when(pl.program_id(0) == 0)
    def _():
        o_ref[...] = jnp.zeros_like(o_ref)

    # (B, tk) . (N, tk) contracting over the lane (K) axis -> (B, N)
    o_ref[...] += lax.dot_general(
        x_ref[...],
        w_ref[...],
        dimension_numbers=(((1,), (1,)), ((), ())),
        preferred_element_type=jnp.float32,
    )


def _pick_tk(K, tk_max):
    """Largest K-tile that evenly divides K, is lane-aligned, and <= tk_max."""
    if K <= tk_max:
        return K  # single block; block dim == full array dim is always legal
    start = tk_max - (tk_max % 128)
    for cand in range(start, 127, -128):
        if K % cand == 0:
            return cand
    # Fallback (K > tk_max and no 128-aligned divisor): one full-width block.
    return K


@functools.partial(jax.jit, static_argnames=("tk_max",))
def mymodel_forward(x, weight, bias, *, tk_max=131072):
    """x: (B, C, H, W) f32; weight: (N_OUT, K) f32; bias: (N_OUT,) f32."""
    B = x.shape[0]
    x_flat = x.reshape(B, -1)  # torch.flatten(x, 1)
    K = x_flat.shape[1]
    N = weight.shape[0]

    tk = _pick_tk(K, tk_max)
    grid = (K // tk,)

    out = pl.pallas_call(
        _linear_kernel,
        out_shape=jax.ShapeDtypeStruct((B, N), jnp.float32),
        grid_spec=pltpu.PrefetchScalarGridSpec(
            num_scalar_prefetch=0,
            grid=grid,
            in_specs=[
                # x K-tile: (B, tk), K on the lane axis.
                pl.BlockSpec((B, tk), lambda k: (0, k)),
                # weight K-tile in natural (N_OUT, K) layout: (N, tk).
                pl.BlockSpec((N, tk), lambda k: (0, k)),
            ],
            # Output resident across the K reduction (constant block index).
            out_specs=pl.BlockSpec((B, N), lambda k: (0, 0)),
        ),
        compiler_params=pltpu.CompilerParams(
            dimension_semantics=("arbitrary",),  # K is a reduction axis
        ),
    )(x_flat, weight)

    # Tiny (B, N_OUT) bias add — cheaper than streaming a bias tile per step.
    return out + bias[None, :]


if __name__ == "__main__":
    # Small shapes consistent with the forward: NCHW input, C=3, H=W=32.
    B, C, H, W = 2, 3, 32, 32
    K = C * H * W

    key = jax.random.PRNGKey(0)
    kx, kw, kb = jax.random.split(key, 3)

    x = jax.random.normal(kx, (B, C, H, W), dtype=jnp.float32)
    # Deterministic parameter init (uniform like nn.Linear's default range).
    bound = 1.0 / (K ** 0.5)
    weight = jax.random.uniform(kw, (N_OUT, K), jnp.float32, -bound, bound)
    bias = jax.random.uniform(kb, (N_OUT,), jnp.float32, -bound, bound)

    y = mymodel_forward(x, weight, bias)
    y = jax.block_until_ready(y)

    # Reference check in plain JAX.
    y_ref = x.reshape(B, -1) @ weight.T + bias
    assert y.shape == (B, N_OUT)
    assert jnp.allclose(y, y_ref, atol=1e-4, rtol=1e-4)

    print("KERNEL_OK")
</pallas_src>

<mosaic_0001>
module attributes {stable_mosaic.version = 11 : i64} {
  func.func @_linear_kernel(%arg0: i32, %arg1: memref<2x3072xf32, #tpu.memory_space<vmem>>, %arg2: memref<2x3072xf32, #tpu.memory_space<vmem>>, %arg3: memref<2x2xf32, #tpu.memory_space<vmem>>) attributes {dimension_semantics = [#tpu.dimension_semantics<arbitrary>], iteration_bounds = array<i64: 1>, scalar_prefetch = 0 : i64, scratch_operands = 0 : i64, tpu.core_type = #tpu.core_type<tc>, window_params = [{transform_indices = @transform_0, window_bounds = array<i64: 2, 3072>}, {transform_indices = @transform_1, window_bounds = array<i64: 2, 3072>}, {pipeline_mode = #tpu.pipeline_mode<synchronous>, transform_indices = @transform_2, window_bounds = array<i64: 2, 2>}]} {
    %c0_i32 = arith.constant 0 : i32
    %0 = arith.cmpi eq, %arg0, %c0_i32 : i32
    %1 = arith.extui %0 : i1 to i32
    %c0_i32_0 = arith.constant 0 : i32
    %2 = arith.cmpi ne, %1, %c0_i32_0 : i32
    scf.if %2 {
      %cst_8 = arith.constant 0.000000e+00 : f32
      %9 = vector.broadcast %cst_8 : f32 to vector<2x2xf32>
      %c0_9 = arith.constant 0 : index
      %c0_10 = arith.constant 0 : index
      %10 = vector.load %arg3[%c0_9, %c0_10] : memref<2x2xf32, #tpu.memory_space<vmem>>, vector<2x2xf32>
      tpu.vector_store %arg3[%c0_9, %c0_10], %9 {strides = array<i32>} : memref<2x2xf32, #tpu.memory_space<vmem>>, vector<2x2xf32>,
    } else {
    }
    %c0 = arith.constant 0 : index
    %c0_1 = arith.constant 0 : index
    %3 = vector.load %arg3[%c0, %c0_1] : memref<2x2xf32, #tpu.memory_space<vmem>>, vector<2x2xf32>
    %c0_2 = arith.constant 0 : index
    %c0_3 = arith.constant 0 : index
    %4 = vector.load %arg1[%c0_2, %c0_3] : memref<2x3072xf32, #tpu.memory_space<vmem>>, vector<2x3072xf32>
    %c0_4 = arith.constant 0 : index
    %c0_5 = arith.constant 0 : index
    %5 = vector.load %arg2[%c0_4, %c0_5] : memref<2x3072xf32, #tpu.memory_space<vmem>>, vector<2x3072xf32>
    %cst = arith.constant dense<0.000000e+00> : vector<2x2xf32>
    %6 = tpu.matmul %4, %5, %cst {dimension_numbers = #tpu.dot_dimension_numbers<[1], [1], [0], [0], [0, 0, 1, 0], [], []>} : vector<2x3072xf32>, vector<2x3072xf32>, vector<2x2xf32> -> vector<2x2xf32>
    %7 = arith.addf %3, %6 : vector<2x2xf32>
    %c0_6 = arith.constant 0 : index
    %c0_7 = arith.constant 0 : index
    %8 = vector.load %arg3[%c0_6, %c0_7] : memref<2x2xf32, #tpu.memory_space<vmem>>, vector<2x2xf32>
    tpu.vector_store %arg3[%c0_6, %c0_7], %7 {strides = array<i32>} : memref<2x2xf32, #tpu.memory_space<vmem>>, vector<2x2xf32>,
    return
  }
  func.func @transform_0(%arg0: i32) -> (i32, i32) {
    %c0_i32 = arith.constant 0 : i32
    %c0_i32_0 = arith.constant 0 : i32
    return %c0_i32, %arg0 : i32, i32
  }
  func.func @transform_1(%arg0: i32) -> (i32, i32) {
    %c0_i32 = arith.constant 0 : i32
    %c0_i32_0 = arith.constant 0 : i32
    return %c0_i32, %arg0 : i32, i32
  }
  func.func @transform_2(%arg0: i32) -> (i32, i32) {
    %c0_i32 = arith.constant 0 : i32
    %c0_i32_0 = arith.constant 0 : i32
    %c0_i32_1 = arith.constant 0 : i32
    return %c0_i32, %c0_i32_0 : i32, i32
  }
}

</mosaic_0001>

<llo_original>
// kernel: mymodel_forward.1
$region0: #{mymodel_forward.1}
  #allocation0 [shape = 'u32[]', space=smem, size = 0x4, offset = 0x4, fixed_abs, tag = 'smem constant byte address 0x4 - core index']
  #allocation1 [shape = 'u32[144,128]{1,0:T(1,128)}', space=vmem, size = 0x12000, scoped, tag = 'internal scratch']
  %s0 = inlined_call_operand.vmem [shape: f32[2,3072], index: 0, kind: input, shape index: {}]
  %s1 = inlined_call_operand.vmem [shape: f32[2,3072], index: 1, kind: input, shape index: {}]
  %s2 = inlined_call_operand.vmem [shape: f32[2,2], index: 2, kind: output, shape index: {}]
  %s3 = sld [smem:[#allocation0]]
  $region22: #{mymodel_forward.1} parent=0
    _
  %s5 = ssub.s32 1, %s3
  %s6 = scalar_select 0, %s5, %s3
  // Predicated region
  $region2: #{mymodel_forward.1} parent=0 // pred_check
    _
  $region3: #{mymodel_forward.1} parent=0 // pred_check_branch
    %8 = sbr.rel (0) target = $region5
  $region4: #{mymodel_forward.1} parent=0 // pred_region
    _
  $region5: #{mymodel_forward.1} parent=0 // pred_fallthru
    _
  // Predicated region
  $region6: #{mymodel_forward.1} parent=0 // pred_check
    _
  $region7: #{mymodel_forward.1} parent=0 // pred_check_branch
    %10 = sbr.rel (0) target = $region9
  $region8: #{mymodel_forward.1} parent=0 // pred_region
    _
  $region9: #{mymodel_forward.1} parent=0 // pred_fallthru
    _
  %p11 = scmp.eq.s32.totalorder 0, 0
  // Predicated region
  $region10: #{mymodel_forward.1} parent=0 // pred_check
    %p12 = pneg %p11
  $region11: #{mymodel_forward.1} parent=0 // pred_check_branch
    %14 = sbr.rel (%p12) target = $region13
  $region12: #{mymodel_forward.1} parent=0 // pred_region
    %vm15 = vcmask 9216
    %16 = vst.msk [vmem:[%s2] sm:$0x3] %vm15, 0.0
  $region13: #{mymodel_forward.1} parent=0 // pred_fallthru
    _
  %v17 = vld [vmem:[%s2] sm:$0x3]
  %v18 = vld [vmem:[%s0] sm:$0xff]
  %v19 = vld [vmem:[%s0 + $0x8] sm:$0xff]
  %v20 = vld [vmem:[%s0 + $0x10] sm:$0xff]
  %v21 = vld [vmem:[%s0 + $0x18] sm:$0xff]
  %v22 = vld [vmem:[%s0 + $0x20] sm:$0xff]
  %v23 = vld [vmem:[%s0 + $0x28] sm:$0xff]
  %v24 = vld [vmem:[%s1] sm:$0xff]
  %v25 = vld [vmem:[%s1 + $0x8] sm:$0xff]
  %v26 = vld [vmem:[%s1 + $0x10] sm:$0xff]
  %v27 = vld [vmem:[%s1 + $0x18] sm:$0xff]
  %v28 = vld [vmem:[%s1 + $0x20] sm:$0xff]
  %v29 = vld [vmem:[%s1 + $0x28] sm:$0xff]
  %v36 = vcombine.high %v18, %v18
  %v38 = vunpack.c.l.s4 1983009808
  %v39 = vunpack.c.0.s8 %v38
  %v40 = vlaneseq
  %v41 = vshrl.u32 %v40, 7
  %v42 = vsub.s32 %v39, %v41
  %v43 = vrot.slane %v18, %v42
  %v45 = vunpack.c.l.s4 1983009808
  %v46 = vunpack.c.0.s8 %v45
  %v47 = vlaneseq
  %v48 = vshrl.u32 %v47, 7
  %v49 = vsub.s32 %v46, %v48
  %v50 = vrot.slane %v36, %v49
  %v51 = vcombine.high %v43, %v43
  %v52 = vcombine.high %v50, %v50
  %v53 = vcombine.high %v19, %v19
  %v55 = vunpack.c.l.s4 1983009808
  %v56 = vunpack.c.0.s8 %v55
  %v57 = vlaneseq
  %v58 = vshrl.u32 %v57, 7
  %v59 = vsub.s32 %v56, %v58
  %v60 = vrot.slane %v19, %v59
  %v62 = vunpack.c.l.s4 1983009808
  %v63 = vunpack.c.0.s8 %v62
  %v64 = vlaneseq
  %v65 = vshrl.u32 %v64, 7
  %v66 = vsub.s32 %v63, %v65
  %v67 = vrot.slane %v53, %v66
  %v68 = vcombine.high %v60, %v60
  %v69 = vcombine.high %v67, %v67
  %v70 = vcombine.high %v20, %v20
  %v72 = vunpack.c.l.s4 1983009808
  %v73 = vunpack.c.0.s8 %v72
  %v74 = vlaneseq
  %v75 = vshrl.u32 %v74, 7
  %v76 = vsub.s32 %v73, %v75
  %v77 = vrot.slane %v20, %v76
  %v79 = vunpack.c.l.s4 1983009808
  %v80 = vunpack.c.0.s8 %v79
  %v81 = vlaneseq
  %v82 = vshrl.u32 %v81, 7
  %v83 = vsub.s32 %v80, %v82
  %v84 = vrot.slane %v70, %v83
  %v85 = vcombine.high %v77, %v77
  %v86 = vcombine.high %v84, %v84
  %v87 = vcombine.high %v21, %v21
  %v89 = vunpack.c.l.s4 1983009808
  %v90 = vunpack.c.0.s8 %v89
  %v91 = vlaneseq
  %v92 = vshrl.u32 %v91, 7
  %v93 = vsub.s32 %v90, %v92
  %v94 = vrot.slane %v21, %v93
  %v96 = vunpack.c.l.s4 1983009808
  %v97 = vunpack.c.0.s8 %v96
  %v98 = vlaneseq
  %v99 = vshrl.u32 %v98, 7
  %v100 = vsub.s32 %v97, %v99
  %v101 = vrot.slane %v87, %v100
  %v102 = vcombine.high %v94, %v94
  %v103 = vcombine.high %v101, %v101
  %v104 = vcombine.high %v22, %v22
  %v106 = vunpack.c.l.s4 1983009808
  %v107 = vunpack.c.0.s8 %v106
  %v108 = vlaneseq
  %v109 = vshrl.u32 %v108, 7
  %v110 = vsub.s32 %v107, %v109
  %v111 = vrot.slane %v22, %v110
  %v113 = vunpack.c.l.s4 1983009808
  %v114 = vunpack.c.0.s8 %v113
  %v115 = vlaneseq
  %v116 = vshrl.u32 %v115, 7
  %v117 = vsub.s32 %v114, %v116
  %v118 = vrot.slane %v104, %v117
  %v119 = vcombine.high %v111, %v111
  %v120 = vcombine.high %v118, %v118
  %v121 = vcombine.high %v23, %v23
  %v123 = vunpack.c.l.s4 1983009808
  %v124 = vunpack.c.0.s8 %v123
  %v125 = vlaneseq
  %v126 = vshrl.u32 %v125, 7
  %v127 = vsub.s32 %v124, %v126
  %v128 = vrot.slane %v23, %v127
  %v130 = vunpack.c.l.s4 1983009808
  %v131 = vunpack.c.0.s8 %v130
  %v132 = vlaneseq
  %v133 = vshrl.u32 %v132, 7
  %v134 = vsub.s32 %v131, %v133
  %v135 = vrot.slane %v121, %v134
  %v136 = vcombine.high %v128, %v128
  %v137 = vcombine.high %v135, %v135
  %v168 = vcombine.high %v24, %v24
  %v170 = vunpack.c.l.s4 1983009808
  %v171 = vunpack.c.0.s8 %v170
  %v172 = vlaneseq
  %v173 = vshrl.u32 %v172, 7
  %v174 = vsub.s32 %v171, %v173
  %v175 = vrot.slane %v24, %v174
  %v177 = vunpack.c.l.s4 1983009808
  %v178 = vunpack.c.0.s8 %v177
  %v179 = vlaneseq
  %v180 = vshrl.u32 %v179, 7
  %v181 = vsub.s32 %v178, %v180
  %v182 = vrot.slane %v168, %v181
  %v183 = vcombine.high %v175, %v175
  %v184 = vcombine.high %v182, %v182
  %v185 = vcombine.high %v25, %v25
  %v187 = vunpack.c.l.s4 1983009808
  %v188 = vunpack.c.0.s8 %v187
  %v189 = vlaneseq
  %v190 = vshrl.u32 %v189, 7
  %v191 = vsub.s32 %v188, %v190
  %v192 = vrot.slane %v25, %v191
  %v194 = vunpack.c.l.s4 1983009808
  %v195 = vunpack.c.0.s8 %v194
  %v196 = vlaneseq
  %v197 = vshrl.u32 %v196, 7
  %v198 = vsub.s32 %v195, %v197
  %v199 = vrot.slane %v185, %v198
  %v200 = vcombine.high %v192, %v192
  %v201 = vcombine.high %v199, %v199
  %v202 = vcombine.high %v26, %v26
  %v204 = vunpack.c.l.s4 1983009808
  %v205 = vunpack.c.0.s8 %v204
  %v206 = vlaneseq
  %v207 = vshrl.u32 %v206, 7
  %v208 = vsub.s32 %v205, %v207
  %v209 = vrot.slane %v26, %v208
  %v211 = vunpack.c.l.s4 1983009808
  %v212 = vunpack.c.0.s8 %v211
  %v213 = vlaneseq
  %v214 = vshrl.u32 %v213, 7
  %v215 = vsub.s32 %v212, %v214
  %v216 = vrot.slane %v202, %v215
  %v217 = vcombine.high %v209, %v209
  %v218 = vcombine.high %v216, %v216
  %v219 = vcombine.high %v27, %v27
  %v221 = vunpack.c.l.s4 1983009808
  %v222 = vunpack.c.0.s8 %v221
  %v223 = vlaneseq
  %v224 = vshrl.u32 %v223, 7
  %v225 = vsub.s32 %v222, %v224
  %v226 = vrot.slane %v27, %v225
  %v228 = vunpack.c.l.s4 1983009808
  %v229 = vunpack.c.0.s8 %v228
  %v230 = vlaneseq
  %v231 = vshrl.u32 %v230, 7
  %v232 = vsub.s32 %v229, %v231
  %v233 = vrot.slane %v219, %v232
  %v234 = vcombine.high %v226, %v226
  %v235 = vcombine.high %v233, %v233
  %v236 = vcombine.high %v28, %v28
  %v238 = vunpack.c.l.s4 1983009808
  %v239 = vunpack.c.0.s8 %v238
  %v240 = vlaneseq
  %v241 = vshrl.u32 %v240, 7
  %v242 = vsub.s32 %v239, %v241
  %v243 = vrot.slane %v28, %v242
  %v245 = vunpack.c.l.s4 1983009808
  %v246 = vunpack.c.0.s8 %v245
  %v247 = vlaneseq
  %v248 = vshrl.u32 %v247, 7
  %v249 = vsub.s32 %v246, %v248
  %v250 = vrot.slane %v236, %v249
  %v251 = vcombine.high %v243, %v243
  %v252 = vcombine.high %v250, %v250
  %v253 = vcombine.high %v29, %v29
  %v255 = vunpack.c.l.s4 1983009808
  %v256 = vunpack.c.0.s8 %v255
  %v257 = vlaneseq
  %v258 = vshrl.u32 %v257, 7
  %v259 = vsub.s32 %v256, %v258
  %v260 = vrot.slane %v29, %v259
  %v262 = vunpack.c.l.s4 1983009808
  %v263 = vunpack.c.0.s8 %v262
  %v264 = vlaneseq
  %v265 = vshrl.u32 %v264, 7
  %v266 = vsub.s32 %v263, %v265
  %v267 = vrot.slane %v253, %v266
  %v268 = vcombine.high %v260, %v260
  %v269 = vcombine.high %v267, %v267
  %294 = vmatprep.subr.mxu0 %v183
  %295 = vmatpush1.xpose.msra.mxu0 %v175
  %296 = vmatprep.subr.mxu0 0.0
  %297 = vmatpush1.xpose.msra.mxu0 0.0
  %298 = vmatprep.subr.mxu0 0.0
  %299 = vmatpush1.xpose.msra.mxu0 0.0
  %300 = vmatprep.subr.mxu0 0.0
  %301 = vmatpush1.xpose.msra.mxu0 0.0
  %302 = vmatprep.subr.mxu0 0.0
  %303 = vmatpush1.xpose.msra.mxu0 0.0
  %304 = vmatprep.subr.mxu0 0.0
  %305 = vmatpush1.xpose.msra.mxu0 0.0
  %306 = vmatprep.subr.mxu0 0.0
  %307 = vmatpush1.xpose.msra.mxu0 0.0
  %308 = vmatprep.subr.mxu0 0.0
  %309 = vmatpush1.xpose.msra.mxu0 0.0
  %310 = vmatprep.subr.mxu0 0.0
  %311 = vmatpush1.xpose.msra.mxu0 0.0
  %312 = vmatprep.subr.mxu0 0.0
  %313 = vmatpush1.xpose.msra.mxu0 0.0
  %314 = vmatprep.subr.mxu0 0.0
  %315 = vmatpush1.xpose.msra.mxu0 0.0
  %316 = vmatprep.subr.mxu0 0.0
  %317 = vmatpush1.xpose.msra.mxu0 0.0
  %318 = vmatprep.subr.mxu0 0.0
  %319 = vmatpush1.xpose.msra.mxu0 0.0
  %320 = vmatprep.subr.mxu0 0.0
  %321 = vmatpush1.xpose.msra.mxu0 0.0
  %322 = vmatprep.subr.mxu0 0.0
  %323 = vmatpush1.xpose.msra.mxu0 0.0
  %324 = vmatprep.subr.mxu0 0.0
  %325 = vmatpush1.xpose.msra.mxu0 0.0
  %326 = vmatprep.subr.mxu0 0.0
  %327 = vmatpush1.xpose.msra.mxu0 0.0
  %328 = vmatprep.subr.mxu0 0.0
  %329 = vmatpush1.xpose.msra.mxu0 0.0
  %330 = vmatprep.subr.mxu0 0.0
  %331 = vmatpush1.xpose.msra.mxu0 0.0
  %332 = vmatprep.subr.mxu0 0.0
  %333 = vmatpush1.xpose.msra.mxu0 0.0
  %334 = vmatprep.subr.mxu0 0.0
  %335 = vmatpush1.xpose.msra.mxu0 0.0
  %336 = vmatprep.subr.mxu0 0.0
  %337 = vmatpush1.xpose.msra.mxu0 0.0
  %338 = vmatprep.subr.mxu0 0.0
  %339 = vmatpush1.xpose.msra.mxu0 0.0
  %340 = vmatprep.subr.mxu0 0.0
  %341 = vmatpush1.xpose.msra.mxu0 0.0
  %342 = vmatprep.subr.mxu0 0.0
  %343 = vmatpush1.xpose.msra.mxu0 0.0
  %344 = vmatprep.subr.mxu0 0.0
  %345 = vmatpush1.xpose.msra.mxu0 0.0
  %346 = vmatprep.subr.mxu0 0.0
  %347 = vmatpush1.xpose.msra.mxu0 0.0
  %348 = vmatprep.subr.mxu0 0.0
  %349 = vmatpush1.xpose.msra.mxu0 0.0
  %350 = vmatprep.subr.mxu0 0.0
  %351 = vmatpush1.xpose.msra.mxu0 0.0
  %352 = vmatprep.subr.mxu0 0.0
  %353 = vmatpush1.xpose.msra.mxu0 0.0
  %354 = vmatprep.subr.mxu0 0.0
  %355 = vmatpush1.xpose.msra.mxu0 0.0
  %356 = vmatprep.subr.mxu0 0.0
  %357 = vmatpush1.xpose.msra.mxu0 0.0
  %358 = vmatprep.mubr.f32.mxu0 %v51
  %359 = vmatmul.mubr.f32.gmra.mrb[0].mxu0 %v43
  %v360 = vpop.f32.mrb[0].mxu0
  %v361 = vadd.f32 0.0, %v360
  %v362 = vpop.f32.mrb[0].mxu0
  %363 = vdwg.mxu0
  %364 = vmatprep.subr.mxu0 %v184
  %365 = vmatpush1.xpose.msra.mxu0 %v182
  %366 = vmatprep.subr.mxu0 0.0
  %367 = vmatpush1.xpose.msra.mxu0 0.0
  %368 = vmatprep.subr.mxu0 0.0
  %369 = vmatpush1.xpose.msra.mxu0 0.0
  %370 = vmatprep.subr.mxu0 0.0
  %371 = vmatpush1.xpose.msra.mxu0 0.0
  %372 = vmatprep.subr.mxu0 0.0
  %373 = vmatpush1.xpose.msra.mxu0 0.0
  %374 = vmatprep.subr.mxu0 0.0
  %375 = vmatpush1.xpose.msra.mxu0 0.0
  %376 = vmatprep.subr.mxu0 0.0
  %377 = vmatpush1.xpose.msra.mxu0 0.0
  %378 = vmatprep.subr.mxu0 0.0
  %379 = vmatpush1.xpose.msra.mxu0 0.0
  %380 = vmatprep.subr.mxu0 0.0
  %381 = vmatpush1.xpose.msra.mxu0 0.0
  %382 = vmatprep.subr.mxu0 0.0
  %383 = vmatpush1.xpose.msra.mxu0 0.0
  %384 = vmatprep.subr.mxu0 0.0
  %385 = vmatpush1.xpose.msra.mxu0 0.0
  %386 = vmatprep.subr.mxu0 0.0
  %387 = vmatpush1.xpose.msra.mxu0 0.0
  %388 = vmatprep.subr.mxu0 0.0
  %389 = vmatpush1.xpose.msra.mxu0 0.0
  %390 = vmatprep.subr.mxu0 0.0
  %391 = vmatpush1.xpose.msra.mxu0 0.0
  %392 = vmatprep.subr.mxu0 0.0
  %393 = vmatpush1.xpose.msra.mxu0 0.0
  %394 = vmatprep.subr.mxu0 0.0
  %395 = vmatpush1.xpose.msra.mxu0 0.0
  %396 = vmatprep.subr.mxu0 0.0
  %397 = vmatpush1.xpose.msra.mxu0 0.0
  %398 = vmatprep.subr.mxu0 0.0
  %399 = vmatpush1.xpose.msra.mxu0 0.0
  %400 = vmatprep.subr.mxu0 0.0
  %401 = vmatpush1.xpose.msra.mxu0 0.0
  %402 = vmatprep.subr.mxu0 0.0
  %403 = vmatpush1.xpose.msra.mxu0 0.0
  %404 = vmatprep.subr.mxu0 0.0
  %405 = vmatpush1.xpose.msra.mxu0 0.0
  %406 = vmatprep.subr.mxu0 0.0
  %407 = vmatpush1.xpose.msra.mxu0 0.0
  %408 = vmatprep.subr.mxu0 0.0
  %409 = vmatpush1.xpose.msra.mxu0 0.0
  %410 = vmatprep.subr.mxu0 0.0
  %411 = vmatpush1.xpose.msra.mxu0 0.0
  %412 = vmatprep.subr.mxu0 0.0
  %413 = vmatpush1.xpose.msra.mxu0 0.0
  %414 = vmatprep.subr.mxu0 0.0
  %415 = vmatpush1.xpose.msra.mxu0 0.0
  %416 = vmatprep.subr.mxu0 0.0
  %417 = vmatpush1.xpose.msra.mxu0 0.0
  %418 = vmatprep.subr.mxu0 0.0
  %419 = vmatpush1.xpose.msra.mxu0 0.0
  %420 = vmatprep.subr.mxu0 0.0
  %421 = vmatpush1.xpose.msra.mxu0 0.0
  %422 = vmatprep.subr.mxu0 0.0
  %423 = vmatpush1.xpose.msra.mxu0 0.0
  %424 = vmatprep.subr.mxu0 0.0
  %425 = vmatpush1.xpose.msra.mxu0 0.0
  %426 = vmatprep.subr.mxu0 0.0
  %427 = vmatpush1.xpose.msra.mxu0 0.0
  %428 = vmatprep.mubr.f32.mxu0 %v52
  %429 = vmatmul.mubr.f32.gmra.mrb[0].mxu0 %v50
  %v430 = vpop.f32.mrb[0].mxu0
  %v431 = vadd.f32 %v361, %v430
  %v432 = vpop.f32.mrb[0].mxu0
  %433 = vdwg.mxu0
  %434 = vmatprep.subr.mxu0 %v200
  %435 = vmatpush1.xpose.msra.mxu0 %v192
  %436 = vmatprep.subr.mxu0 0.0
  %437 = vmatpush1.xpose.msra.mxu0 0.0
  %438 = vmatprep.subr.mxu0 0.0
  %439 = vmatpush1.xpose.msra.mxu0 0.0
  %440 = vmatprep.subr.mxu0 0.0
  %441 = vmatpush1.xpose.msra.mxu0 0.0
  %442 = vmatprep.subr.mxu0 0.0
  %443 = vmatpush1.xpose.msra.mxu0 0.0
  %444 = vmatprep.subr.mxu0 0.0
  %445 = vmatpush1.xpose.msra.mxu0 0.0
  %446 = vmatprep.subr.mxu0 0.0
  %447 = vmatpush1.xpose.msra.mxu0 0.0
  %448 = vmatprep.subr.mxu0 0.0
  %449 = vmatpush1.xpose.msra.mxu0 0.0
  %450 = vmatprep.subr.mxu0 0.0
  %451 = vmatpush1.xpose.msra.mxu0 0.0
  %452 = vmatprep.subr.mxu0 0.0
  %453 = vmatpush1.xpose.msra.mxu0 0.0
  %454 = vmatprep.subr.mxu0 0.0
  %455 = vmatpush1.xpose.msra.mxu0 0.0
  %456 = vmatprep.subr.mxu0 0.0
  %457 = vmatpush1.xpose.msra.mxu0 0.0
  %458 = vmatprep.subr.mxu0 0.0
  %459 = vmatpush1.xpose.msra.mxu0 0.0
  %460 = vmatprep.subr.mxu0 0.0
  %461 = vmatpush1.xpose.msra.mxu0 0.0
  %462 = vmatprep.subr.mxu0 0.0
  %463 = vmatpush1.xpose.msra.mxu0 0.0
  %464 = vmatprep.subr.mxu0 0.0
  %465 = vmatpush1.xpose.msra.mxu0 0.0
  %466 = vmatprep.subr.mxu0 0.0
  %467 = vmatpush1.xpose.msra.mxu0 0.0
  %468 = vmatprep.subr.mxu0 0.0
  %469 = vmatpush1.xpose.msra.mxu0 0.0
  %470 = vmatprep.subr.mxu0 0.0
  %471 = vmatpush1.xpose.msra.mxu0 0.0
  %472 = vmatprep.subr.mxu0 0.0
  %473 = vmatpush1.xpose.msra.mxu0 0.0
  %474 = vmatprep.subr.mxu0 0.0
  %475 = vmatpush1.xpose.msra.mxu0 0.0
  %476 = vmatprep.subr.mxu0 0.0
  %477 = vmatpush1.xpose.msra.mxu0 0.0
  %478 = vmatprep.subr.mxu0 0.0
  %479 = vmatpush1.xpose.msra.mxu0 0.0
  %480 = vmatprep.subr.mxu0 0.0
  %481 = vmatpush1.xpose.msra.mxu0 0.0
  %482 = vmatprep.subr.mxu0 0.0
  %483 = vmatpush1.xpose.msra.mxu0 0.0
  %484 = vmatprep.subr.mxu0 0.0
  %485 = vmatpush1.xpose.msra.mxu0 0.0
  %486 = vmatprep.subr.mxu0 0.0
  %487 = vmatpush1.xpose.msra.mxu0 0.0
  %488 = vmatprep.subr.mxu0 0.0
  %489 = vmatpush1.xpose.msra.mxu0 0.0
  %490 = vmatprep.subr.mxu0 0.0
  %491 = vmatpush1.xpose.msra.mxu0 0.0
  %492 = vmatprep.subr.mxu0 0.0
  %493 = vmatpush1.xpose.msra.mxu0 0.0
  %494 = vmatprep.subr.mxu0 0.0
  %495 = vmatpush1.xpose.msra.mxu0 0.0
  %496 = vmatprep.subr.mxu0 0.0
  %497 = vmatpush1.xpose.msra.mxu0 0.0
  %498 = vmatprep.mubr.f32.mxu0 %v68
  %499 = vmatmul.mubr.f32.gmra.mrb[0].mxu0 %v60
  %v500 = vpop.f32.mrb[0].mxu0
  %v501 = vadd.f32 %v431, %v500
  %v502 = vpop.f32.mrb[0].mxu0
  %503 = vdwg.mxu0
  %504 = vmatprep.subr.mxu0 %v201
  %505 = vmatpush1.xpose.msra.mxu0 %v199
  %506 = vmatprep.subr.mxu0 0.0
  %507 = vmatpush1.xpose.msra.mxu0 0.0
  %508 = vmatprep.subr.mxu0 0.0
  %509 = vmatpush1.xpose.msra.mxu0 0.0
  %510 = vmatprep.subr.mxu0 0.0
  %511 = vmatpush1.xpose.msra.mxu0 0.0
  %512 = vmatprep.subr.mxu0 0.0
  %513 = vmatpush1.xpose.msra.mxu0 0.0
  %514 = vmatprep.subr.mxu0 0.0
  %515 = vmatpush1.xpose.msra.mxu0 0.0
  %516 = vmatprep.subr.mxu0 0.0
  %517 = vmatpush1.xpose.msra.mxu0 0.0
  %518 = vmatprep.subr.mxu0 0.0
  %519 = vmatpush1.xpose.msra.mxu0 0.0
  %520 = vmatprep.subr.mxu0 0.0
  %521 = vmatpush1.xpose.msra.mxu0 0.0
  %522 = vmatprep.subr.mxu0 0.0
  %523 = vmatpush1.xpose.msra.mxu0 0.0
  %524 = vmatprep.subr.mxu0 0.0
  %525 = vmatpush1.xpose.msra.mxu0 0.0
  %526 = vmatprep.subr.mxu0 0.0
  %527 = vmatpush1.xpose.msra.mxu0 0.0
  %528 = vmatprep.subr.mxu0 0.0
  %529 = vmatpush1.xpose.msra.mxu0 0.0
  %530 = vmatprep.subr.mxu0 0.0
  %531 = vmatpush1.xpose.msra.mxu0 0.0
  %532 = vmatprep.subr.mxu0 0.0
  %533 = vmatpush1.xpose.msra.mxu0 0.0
  %534 = vmatprep.subr.mxu0 0.0
  %535 = vmatpush1.xpose.msra.mxu0 0.0
  %536 = vmatprep.subr.mxu0 0.0
  %537 = vmatpush1.xpose.msra.mxu0 0.0
  %538 = vmatprep.subr.mxu0 0.0
  %539 = vmatpush1.xpose.msra.mxu0 0.0
  %540 = vmatprep.subr.mxu0 0.0
  %541 = vmatpush1.xpose.msra.mxu0 0.0
  %542 = vmatprep.subr.mxu0 0.0
  %543 = vmatpush1.xpose.msra.mxu0 0.0
  %544 = vmatprep.subr.mxu0 0.0
  %545 = vmatpush1.xpose.msra.mxu0 0.0
  %546 = vmatprep.subr.mxu0 0.0
  %547 = vmatpush1.xpose.msra.mxu0 0.0
  %548 = vmatprep.subr.mxu0 0.0
  %549 = vmatpush1.xpose.msra.mxu0 0.0
  %550 = vmatprep.subr.mxu0 0.0
  %551 = vmatpush1.xpose.msra.mxu0 0.0
  %552 = vmatprep.subr.mxu0 0.0
  %553 = vmatpush1.xpose.msra.mxu0 0.0
  %554 = vmatprep.subr.mxu0 0.0
  %555 = vmatpush1.xpose.msra.mxu0 0.0
  %556 = vmatprep.subr.mxu0 0.0
  %557 = vmatpush1.xpose.msra.mxu0 0.0
  %558 = vmatprep.subr.mxu0 0.0
  %559 = vmatpush1.xpose.msra.mxu0 0.0
  %560 = vmatprep.subr.mxu0 0.0
  %561 = vmatpush1.xpose.msra.mxu0 0.0
  %562 = vmatprep.subr.mxu0 0.0
  %563 = vmatpush1.xpose.msra.mxu0 0.0
  %564 = vmatprep.subr.mxu0 0.0
  %565 = vmatpush1.xpose.msra.mxu0 0.0
  %566 = vmatprep.subr.mxu0 0.0
  %567 = vmatpush1.xpose.msra.mxu0 0.0
  %568 = vmatprep.mubr.f32.mxu0 %v69
  %569 = vmatmul.mubr.f32.gmra.mrb[0].mxu0 %v67
  %v570 = vpop.f32.mrb[0].mxu0
  %v571 = vadd.f32 %v501, %v570
  %v572 = vpop.f32.mrb[0].mxu0
  %573 = vdwg.mxu0
  %574 = vmatprep.subr.mxu0 %v217
  %575 = vmatpush1.xpose.msra.mxu0 %v209
  %576 = vmatprep.subr.mxu0 0.0
  %577 = vmatpush1.xpose.msra.mxu0 0.0
  %578 = vmatprep.subr.mxu0 0.0
  %579 = vmatpush1.xpose.msra.mxu0 0.0
  %580 = vmatprep.subr.mxu0 0.0
  %581 = vmatpush1.xpose.msra.mxu0 0.0
  %582 = vmatprep.subr.mxu0 0.0
  %583 = vmatpush1.xpose.msra.mxu0 0.0
  %584 = vmatprep.subr.mxu0 0.0
  %585 = vmatpush1.xpose.msra.mxu0 0.0
  %586 = vmatprep.subr.mxu0 0.0
  %587 = vmatpush1.xpose.msra.mxu0 0.0
  %588 = vmatprep.subr.mxu0 0.0
  %589 = vmatpush1.xpose.msra.mxu0 0.0
  %590 = vmatprep.subr.mxu0 0.0
  %591 = vmatpush1.xpose.msra.mxu0 0.0
  %592 = vmatprep.subr.mxu0 0.0
  %593 = vmatpush1.xpose.msra.mxu0 0.0
  %594 = vmatprep.subr.mxu0 0.0
  %595 = vmatpush1.xpose.msra.mxu0 0.0
  %596 = vmatprep.subr.mxu0 0.0
  %597 = vmatpush1.xpose.msra.mxu0 0.0
  %598 = vmatprep.subr.mxu0 0.0
  %599 = vmatpush1.xpose.msra.mxu0 0.0
  %600 = vmatprep.subr.mxu0 0.0
  %601 = vmatpush1.xpose.msra.mxu0 0.0
  %602 = vmatprep.subr.mxu0 0.0
  %603 = vmatpush1.xpose.msra.mxu0 0.0
  %604 = vmatprep.subr.mxu0 0.0
  %605 = vmatpush1.xpose.msra.mxu0 0.0
  %606 = vmatprep.subr.mxu0 0.0
  %607 = vmatpush1.xpose.msra.mxu0 0.0
  %608 = vmatprep.subr.mxu0 0.0
  %609 = vmatpush1.xpose.msra.mxu0 0.0
  %610 = vmatprep.subr.mxu0 0.0
  %611 = vmatpush1.xpose.msra.mxu0 0.0
  %612 = vmatprep.subr.mxu0 0.0
  %613 = vmatpush1.xpose.msra.mxu0 0.0
  %614 = vmatprep.subr.mxu0 0.0
  %615 = vmatpush1.xpose.msra.mxu0 0.0
  %616 = vmatprep.subr.mxu0 0.0
  %617 = vmatpush1.xpose.msra.mxu0 0.0
  %618 = vmatprep.subr.mxu0 0.0
  %619 = vmatpush1.xpose.msra.mxu0 0.0
  %620 = vmatprep.subr.mxu0 0.0
  %621 = vmatpush1.xpose.msra.mxu0 0.0
  %622 = vmatprep.subr.mxu0 0.0
  %623 = vmatpush1.xpose.msra.mxu0 0.0
  %624 = vmatprep.subr.mxu0 0.0
  %625 = vmatpush1.xpose.msra.mxu0 0.0
  %626 = vmatprep.subr.mxu0 0.0
  %627 = vmatpush1.xpose.msra.mxu0 0.0
  %628 = vmatprep.subr.mxu0 0.0
  %629 = vmatpush1.xpose.msra.mxu0 0.0
  %630 = vmatprep.subr.mxu0 0.0
  %631 = vmatpush1.xpose.msra.mxu0 0.0
  %632 = vmatprep.subr.mxu0 0.0
  %633 = vmatpush1.xpose.msra.mxu0 0.0
  %634 = vmatprep.subr.mxu0 0.0
  %635 = vmatpush1.xpose.msra.mxu0 0.0
  %636 = vmatprep.subr.mxu0 0.0
  %637 = vmatpush1.xpose.msra.mxu0 0.0
  %638 = vmatprep.mubr.f32.mxu0 %v85
  %639 = vmatmul.mubr.f32.gmra.mrb[0].mxu0 %v77
  %v640 = vpop.f32.mrb[0].mxu0
  %v641 = vadd.f32 %v571, %v640
  %v642 = vpop.f32.mrb[0].mxu0
  %643 = vdwg.mxu0
  %644 = vmatprep.subr.mxu0 %v218
  %645 = vmatpush1.xpose.msra.mxu0 %v216
  %646 = vmatprep.subr.mxu0 0.0
  %647 = vmatpush1.xpose.msra.mxu0 0.0
  %648 = vmatprep.subr.mxu0 0.0
  %649 = vmatpush1.xpose.msra.mxu0 0.0
  %650 = vmatprep.subr.mxu0 0.0
  %651 = vmatpush1.xpose.msra.mxu0 0.0
  %652 = vmatprep.subr.mxu0 0.0
  %653 = vmatpush1.xpose.msra.mxu0 0.0
  %654 = vmatprep.subr.mxu0 0.0
  %655 = vmatpush1.xpose.msra.mxu0 0.0
  %656 = vmatprep.subr.mxu0 0.0
  %657 = vmatpush1.xpose.msra.mxu0 0.0
  %658 = vmatprep.subr.mxu0 0.0
  %659 = vmatpush1.xpose.msra.mxu0 0.0
  %660 = vmatprep.subr.mxu0 0.0
  %661 = vmatpush1.xpose.msra.mxu0 0.0
  %662 = vmatprep.subr.mxu0 0.0
  %663 = vmatpush1.xpose.msra.mxu0 0.0
  %664 = vmatprep.subr.mxu0 0.0
  %665 = vmatpush1.xpose.msra.mxu0 0.0
  %666 = vmatprep.subr.mxu0 0.0
  %667 = vmatpush1.xpose.msra.mxu0 0.0
  %668 = vmatprep.subr.mxu0 0.0
  %669 = vmatpush1.xpose.msra.mxu0 0.0
  %670 = vmatprep.subr.mxu0 0.0
  %671 = vmatpush1.xpose.msra.mxu0 0.0
  %672 = vmatprep.subr.mxu0 0.0
  %673 = vmatpush1.xpose.msra.mxu0 0.0
  %674 = vmatprep.subr.mxu0 0.0
  %675 = vmatpush1.xpose.msra.mxu0 0.0
  %676 = vmatprep.subr.mxu0 0.0
  %677 = vmatpush1.xpose.msra.mxu0 0.0
  %678 = vmatprep.subr.mxu0 0.0
  %679 = vmatpush1.xpose.msra.mxu0 0.0
  %680 = vmatprep.subr.mxu0 0.0
  %681 = vmatpush1.xpose.msra.mxu0 0.0
  %682 = vmatprep.subr.mxu0 0.0
  %683 = vmatpush1.xpose.msra.mxu0 0.0
  %684 = vmatprep.subr.mxu0 0.0
  %685 = vmatpush1.xpose.msra.mxu0 0.0
  %686 = vmatprep.subr.mxu0 0.0
  %687 = vmatpush1.xpose.msra.mxu0 0.0
  %688 = vmatprep.subr.mxu0 0.0
  %689 = vmatpush1.xpose.msra.mxu0 0.0
  %690 = vmatprep.subr.mxu0 0.0
  %691 = vmatpush1.xpose.msra.mxu0 0.0
  %692 = vmatprep.subr.mxu0 0.0
  %693 = vmatpush1.xpose.msra.mxu0 0.0
  %694 = vmatprep.subr.mxu0 0.0
  %695 = vmatpush1.xpose.msra.mxu0 0.0
  %696 = vmatprep.subr.mxu0 0.0
  %697 = vmatpush1.xpose.msra.mxu0 0.0
  %698 = vmatprep.subr.mxu0 0.0
  %699 = vmatpush1.xpose.msra.mxu0 0.0
  %700 = vmatprep.subr.mxu0 0.0
  %701 = vmatpush1.xpose.msra.mxu0 0.0
  %702 = vmatprep.subr.mxu0 0.0
  %703 = vmatpush1.xpose.msra.mxu0 0.0
  %704 = vmatprep.subr.mxu0 0.0
  %705 = vmatpush1.xpose.msra.mxu0 0.0
  %706 = vmatprep.subr.mxu0 0.0
  %707 = vmatpush1.xpose.msra.mxu0 0.0
  %708 = vmatprep.mubr.f32.mxu0 %v86
  %709 = vmatmul.mubr.f32.gmra.mrb[0].mxu0 %v84
  %v710 = vpop.f32.mrb[0].mxu0
  %v711 = vadd.f32 %v641, %v710
  %v712 = vpop.f32.mrb[0].mxu0
  %713 = vdwg.mxu0
  %714 = vmatprep.subr.mxu0 %v234
  %715 = vmatpush1.xpose.msra.mxu0 %v226
  %716 = vmatprep.subr.mxu0 0.0
  %717 = vmatpush1.xpose.msra.mxu0 0.0
  %718 = vmatprep.subr.mxu0 0.0
  %719 = vmatpush1.xpose.msra.mxu0 0.0
  %720 = vmatprep.subr.mxu0 0.0
  %721 = vmatpush1.xpose.msra.mxu0 0.0
  %722 = vmatprep.subr.mxu0 0.0
  %723 = vmatpush1.xpose.msra.mxu0 0.0
  %724 = vmatprep.subr.mxu0 0.0
  %725 = vmatpush1.xpose.msra.mxu0 0.0
  %726 = vmatprep.subr.mxu0 0.0
  %727 = vmatpush1.xpose.msra.mxu0 0.0
  %728 = vmatprep.subr.mxu0 0.0
  %729 = vmatpush1.xpose.msra.mxu0 0.0
  %730 = vmatprep.subr.mxu0 0.0
  %731 = vmatpush1.xpose.msra.mxu0 0.0
  %732 = vmatprep.subr.mxu0 0.0
  %733 = vmatpush1.xpose.msra.mxu0 0.0
  %734 = vmatprep.subr.mxu0 0.0
  %735 = vmatpush1.xpose.msra.mxu0 0.0
  %736 = vmatprep.subr.mxu0 0.0
  %737 = vmatpush1.xpose.msra.mxu0 0.0
  %738 = vmatprep.subr.mxu0 0.0
  %739 = vmatpush1.xpose.msra.mxu0 0.0
  %740 = vmatprep.subr.mxu0 0.0
  %741 = vmatpush1.xpose.msra.mxu0 0.0
  %742 = vmatprep.subr.mxu0 0.0
  %743 = vmatpush1.xpose.msra.mxu0 0.0
  %744 = vmatprep.subr.mxu0 0.0
  %745 = vmatpush1.xpose.msra.mxu0 0.0
  %746 = vmatprep.subr.mxu0 0.0
  %747 = vmatpush1.xpose.msra.mxu0 0.0
  %748 = vmatprep.subr.mxu0 0.0
  %749 = vmatpush1.xpose.msra.mxu0 0.0
  %750 = vmatprep.subr.mxu0 0.0
  %751 = vmatpush1.xpose.msra.mxu0 0.0
  %752 = vmatprep.subr.mxu0 0.0
  %753 = vmatpush1.xpose.msra.mxu0 0.0
  %754 = vmatprep.subr.mxu0 0.0
  %755 = vmatpush1.xpose.msra.mxu0 0.0
  %756 = vmatprep.subr.mxu0 0.0
  %757 = vmatpush1.xpose.msra.mxu0 0.0
  %758 = vmatprep.subr.mxu0 0.0
  %759 = vmatpush1.xpose.msra.mxu0 0.0
  %760 = vmatprep.subr.mxu0 0.0
  %761 = vmatpush1.xpose.msra.mxu0 0.0
  %762 = vmatprep.subr.mxu0 0.0
  %763 = vmatpush1.xpose.msra.mxu0 0.0
  %764 = vmatprep.subr.mxu0 0.0
  %765 = vmatpush1.xpose.msra.mxu0 0.0
  %766 = vmatprep.subr.mxu0 0.0
  %767 = vmatpush1.xpose.msra.mxu0 0.0
  %768 = vmatprep.subr.mxu0 0.0
  %769 = vmatpush1.xpose.msra.mxu0 0.0
  %770 = vmatprep.subr.mxu0 0.0
  %771 = vmatpush1.xpose.msra.mxu0 0.0
  %772 = vmatprep.subr.mxu0 0.0
  %773 = vmatpush1.xpose.msra.mxu0 0.0
  %774 = vmatprep.subr.mxu0 0.0
  %775 = vmatpush1.xpose.msra.mxu0 0.0
  %776 = vmatprep.subr.mxu0 0.0
  %777 = vmatpush1.xpose.msra.mxu0 0.0
  %778 = vmatprep.mubr.f32.mxu0 %v102
  %779 = vmatmul.mubr.f32.gmra.mrb[0].mxu0 %v94
  %v780 = vpop.f32.mrb[0].mxu0
  %v781 = vadd.f32 %v711, %v780
  %v782 = vpop.f32.mrb[0].mxu0
  %783 = vdwg.mxu0
  %784 = vmatprep.subr.mxu0 %v235
  %785 = vmatpush1.xpose.msra.mxu0 %v233
  %786 = vmatprep.subr.mxu0 0.0
  %787 = vmatpush1.xpose.msra.mxu0 0.0
  %788 = vmatprep.subr.mxu0 0.0
  %789 = vmatpush1.xpose.msra.mxu0 0.0
  %790 = vmatprep.subr.mxu0 0.0
  %791 = vmatpush1.xpose.msra.mxu0 0.0
  %792 = vmatprep.subr.mxu0 0.0
  %793 = vmatpush1.xpose.msra.mxu0 0.0
  %794 = vmatprep.subr.mxu0 0.0
  %795 = vmatpush1.xpose.msra.mxu0 0.0
  %796 = vmatprep.subr.mxu0 0.0
  %797 = vmatpush1.xpose.msra.mxu0 0.0
  %798 = vmatprep.subr.mxu0 0.0
  %799 = vmatpush1.xpose.msra.mxu0 0.0
  %800 = vmatprep.subr.mxu0 0.0
  %801 = vmatpush1.xpose.msra.mxu0 0.0
  %802 = vmatprep.subr.mxu0 0.0
  %803 = vmatpush1.xpose.msra.mxu0 0.0
  %804 = vmatprep.subr.mxu0 0.0
  %805 = vmatpush1.xpose.msra.mxu0 0.0
  %806 = vmatprep.subr.mxu0 0.0
  %807 = vmatpush1.xpose.msra.mxu0 0.0
  %808 = vmatprep.subr.mxu0 0.0
  %809 = vmatpush1.xpose.msra.mxu0 0.0
  %810 = vmatprep.subr.mxu0 0.0
  %811 = vmatpush1.xpose.msra.mxu0 0.0
  %812 = vmatprep.subr.mxu0 0.0
  %813 = vmatpush1.xpose.msra.mxu0 0.0
  %814 = vmatprep.subr.mxu0 0.0
  %815 = vmatpush1.xpose.msra.mxu0 0.0
  %816 = vmatprep.subr.mxu0 0.0
  %817 = vmatpush1.xpose.msra.mxu0 0.0
  %818 = vmatprep.subr.mxu0 0.0
  %819 = vmatpush1.xpose.msra.mxu0 0.0
  %820 = vmatprep.subr.mxu0 0.0
  %821 = vmatpush1.xpose.msra.mxu0 0.0
  %822 = vmatprep.subr.mxu0 0.0
  %823 = vmatpush1.xpose.msra.mxu0 0.0
  %824 = vmatprep.subr.mxu0 0.0
  %825 = vmatpush1.xpose.msra.mxu0 0.0
  %826 = vmatprep.subr.mxu0 0.0
  %827 = vmatpush1.xpose.msra.mxu0 0.0
  %828 = vmatprep.subr.mxu0 0.0
  %829 = vmatpush1.xpose.msra.mxu0 0.0
  %830 = vmatprep.subr.mxu0 0.0
  %831 = vmatpush1.xpose.msra.mxu0 0.0
  %832 = vmatprep.subr.mxu0 0.0
  %833 = vmatpush1.xpose.msra.mxu0 0.0
  %834 = vmatprep.subr.mxu0 0.0
  %835 = vmatpush1.xpose.msra.mxu0 0.0
  %836 = vmatprep.subr.mxu0 0.0
  %837 = vmatpush1.xpose.msra.mxu0 0.0
  %838 = vmatprep.subr.mxu0 0.0
  %839 = vmatpush1.xpose.msra.mxu0 0.0
  %840 = vmatprep.subr.mxu0 0.0
  %841 = vmatpush1.xpose.msra.mxu0 0.0
  %842 = vmatprep.subr.mxu0 0.0
  %843 = vmatpush1.xpose.msra.mxu0 0.0
  %844 = vmatprep.subr.mxu0 0.0
  %845 = vmatpush1.xpose.msra.mxu0 0.0
  %846 = vmatprep.subr.mxu0 0.0
  %847 = vmatpush1.xpose.msra.mxu0 0.0
  %848 = vmatprep.mubr.f32.mxu0 %v103
  %849 = vmatmul.mubr.f32.gmra.mrb[0].mxu0 %v101
  %v850 = vpop.f32.mrb[0].mxu0
  %v851 = vadd.f32 %v781, %v850
  %v852 = vpop.f32.mrb[0].mxu0
  %853 = vdwg.mxu0
  %854 = vmatprep.subr.mxu0 %v251
  %855 = vmatpush1.xpose.msra.mxu0 %v243
  %856 = vmatprep.subr.mxu0 0.0
  %857 = vmatpush1.xpose.msra.mxu0 0.0
  %858 = vmatprep.subr.mxu0 0.0
  %859 = vmatpush1.xpose.msra.mxu0 0.0
  %860 = vmatprep.subr.mxu0 0.0
  %861 = vmatpush1.xpose.msra.mxu0 0.0
  %862 = vmatprep.subr.mxu0 0.0
  %863 = vmatpush1.xpose.msra.mxu0 0.0
  %864 = vmatprep.subr.mxu0 0.0
  %865 = vmatpush1.xpose.msra.mxu0 0.0
  %866 = vmatprep.subr.mxu0 0.0
  %867 = vmatpush1.xpose.msra.mxu0 0.0
  %868 = vmatprep.subr.mxu0 0.0
  %869 = vmatpush1.xpose.msra.mxu0 0.0
  %870 = vmatprep.subr.mxu0 0.0
  %871 = vmatpush1.xpose.msra.mxu0 0.0
  %872 = vmatprep.subr.mxu0 0.0
  %873 = vmatpush1.xpose.msra.mxu0 0.0
  %874 = vmatprep.subr.mxu0 0.0
  %875 = vmatpush1.xpose.msra.mxu0 0.0
  %876 = vmatprep.subr.mxu0 0.0
  %877 = vmatpush1.xpose.msra.mxu0 0.0
  %878 = vmatprep.subr.mxu0 0.0
  %879 = vmatpush1.xpose.msra.mxu0 0.0
  %880 = vmatprep.subr.mxu0 0.0
  %881 = vmatpush1.xpose.msra.mxu0 0.0
  %882 = vmatprep.subr.mxu0 0.0
  %883 = vmatpush1.xpose.msra.mxu0 0.0
  %884 = vmatprep.subr.mxu0 0.0
  %885 = vmatpush1.xpose.msra.mxu0 0.0
  %886 = vmatprep.subr.mxu0 0.0
  %887 = vmatpush1.xpose.msra.mxu0 0.0
  %888 = vmatprep.subr.mxu0 0.0
  %889 = vmatpush1.xpose.msra.mxu0 0.0
  %890 = vmatprep.subr.mxu0 0.0
  %891 = vmatpush1.xpose.msra.mxu0 0.0
  %892 = vmatprep.subr.mxu0 0.0
  %893 = vmatpush1.xpose.msra.mxu0 0.0
  %894 = vmatprep.subr.mxu0 0.0
  %895 = vmatpush1.xpose.msra.mxu0 0.0
  %896 = vmatprep.subr.mxu0 0.0
  %897 = vmatpush1.xpose.msra.mxu0 0.0
  %898 = vmatprep.subr.mxu0 0.0
  %899 = vmatpush1.xpose.msra.mxu0 0.0
  %900 = vmatprep.subr.mxu0 0.0
  %901 = vmatpush1.xpose.msra.mxu0 0.0
  %902 = vmatprep.subr.mxu0 0.0
  %903 = vmatpush1.xpose.msra.mxu0 0.0
  %904 = vmatprep.subr.mxu0 0.0
  %905 = vmatpush1.xpose.msra.mxu0 0.0
  %906 = vmatprep.subr.mxu0 0.0
  %907 = vmatpush1.xpose.msra.mxu0 0.0
  %908 = vmatprep.subr.mxu0 0.0
  %909 = vmatpush1.xpose.msra.mxu0 0.0
  %910 = vmatprep.subr.mxu0 0.0
  %911 = vmatpush1.xpose.msra.mxu0 0.0
  %912 = vmatprep.subr.mxu0 0.0
  %913 = vmatpush1.xpose.msra.mxu0 0.0
  %914 = vmatprep.subr.mxu0 0.0
  %915 = vmatpush1.xpose.msra.mxu0 0.0
  %916 = vmatprep.subr.mxu0 0.0
  %917 = vmatpush1.xpose.msra.mxu0 0.0
  %918 = vmatprep.mubr.f32.mxu0 %v119
  %919 = vmatmul.mubr.f32.gmra.mrb[0].mxu0 %v111
  %v920 = vpop.f32.mrb[0].mxu0
  %v921 = vadd.f32 %v851, %v920
  %v922 = vpop.f32.mrb[0].mxu0
  %923 = vdwg.mxu0
  %924 = vmatprep.subr.mxu0 %v252
  %925 = vmatpush1.xpose.msra.mxu0 %v250
  %926 = vmatprep.subr.mxu0 0.0
  %927 = vmatpush1.xpose.msra.mxu0 0.0
  %928 = vmatprep.subr.mxu0 0.0
  %929 = vmatpush1.xpose.msra.mxu0 0.0
  %930 = vmatprep.subr.mxu0 0.0
  %931 = vmatpush1.xpose.msra.mxu0 0.0
  %932 = vmatprep.subr.mxu0 0.0
  %933 = vmatpush1.xpose.msra.mxu0 0.0
  %934 = vmatprep.subr.mxu0 0.0
  %935 = vmatpush1.xpose.msra.mxu0 0.0
  %936 = vmatprep.subr.mxu0 0.0
  %937 = vmatpush1.xpose.msra.mxu0 0.0
  %938 = vmatprep.subr.mxu0 0.0
  %939 = vmatpush1.xpose.msra.mxu0 0.0
  %940 = vmatprep.subr.mxu0 0.0
  %941 = vmatpush1.xpose.msra.mxu0 0.0
  %942 = vmatprep.subr.mxu0 0.0
  %943 = vmatpush1.xpose.msra.mxu0 0.0
  %944 = vmatprep.subr.mxu0 0.0
  %945 = vmatpush1.xpose.msra.mxu0 0.0
  %946 = vmatprep.subr.mxu0 0.0
  %947 = vmatpush1.xpose.msra.mxu0 0.0
  %948 = vmatprep.subr.mxu0 0.0
  %949 = vmatpush1.xpose.msra.mxu0 0.0
  %950 = vmatprep.subr.mxu0 0.0
  %951 = vmatpush1.xpose.msra.mxu0 0.0
  %952 = vmatprep.subr.mxu0 0.0
  %953 = vmatpush1.xpose.msra.mxu0 0.0
  %954 = vmatprep.subr.mxu0 0.0
  %955 = vmatpush1.xpose.msra.mxu0 0.0
  %956 = vmatprep.subr.mxu0 0.0
  %957 = vmatpush1.xpose.msra.mxu0 0.0
  %958 = vmatprep.subr.mxu0 0.0
  %959 = vmatpush1.xpose.msra.mxu0 0.0
  %960 = vmatprep.subr.mxu0 0.0
  %961 = vmatpush1.xpose.msra.mxu0 0.0
  %962 = vmatprep.subr.mxu0 0.0
  %963 = vmatpush1.xpose.msra.mxu0 0.0
  %964 = vmatprep.subr.mxu0 0.0
  %965 = vmatpush1.xpose.msra.mxu0 0.0
  %966 = vmatprep.subr.mxu0 0.0
  %967 = vmatpush1.xpose.msra.mxu0 0.0
  %968 = vmatprep.subr.mxu0 0.0
  %969 = vmatpush1.xpose.msra.mxu0 0.0
  %970 = vmatprep.subr.mxu0 0.0
  %971 = vmatpush1.xpose.msra.mxu0 0.0
  %972 = vmatprep.subr.mxu0 0.0
  %973 = vmatpush1.xpose.msra.mxu0 0.0
  %974 = vmatprep.subr.mxu0 0.0
  %975 = vmatpush1.xpose.msra.mxu0 0.0
  %976 = vmatprep.subr.mxu0 0.0
  %977 = vmatpush1.xpose.msra.mxu0 0.0
  %978 = vmatprep.subr.mxu0 0.0
  %979 = vmatpush1.xpose.msra.mxu0 0.0
  %980 = vmatprep.subr.mxu0 0.0
  %981 = vmatpush1.xpose.msra.mxu0 0.0
  %982 = vmatprep.subr.mxu0 0.0
  %983 = vmatpush1.xpose.msra.mxu0 0.0
  %984 = vmatprep.subr.mxu0 0.0
  %985 = vmatpush1.xpose.msra.mxu0 0.0
  %986 = vmatprep.subr.mxu0 0.0
  %987 = vmatpush1.xpose.msra.mxu0 0.0
  %988 = vmatprep.mubr.f32.mxu0 %v120
  %989 = vmatmul.mubr.f32.gmra.mrb[0].mxu0 %v118
  %v990 = vpop.f32.mrb[0].mxu0
  %v991 = vadd.f32 %v921, %v990
  %v992 = vpop.f32.mrb[0].mxu0
  %993 = vdwg.mxu0
  %994 = vmatprep.subr.mxu0 %v268
  %995 = vmatpush1.xpose.msra.mxu0 %v260
  %996 = vmatprep.subr.mxu0 0.0
  %997 = vmatpush1.xpose.msra.mxu0 0.0
  %998 = vmatprep.subr.mxu0 0.0
  %999 = vmatpush1.xpose.msra.mxu0 0.0
  %1000 = vmatprep.subr.mxu0 0.0
  %1001 = vmatpush1.xpose.msra.mxu0 0.0
  %1002 = vmatprep.subr.mxu0 0.0
  %1003 = vmatpush1.xpose.msra.mxu0 0.0
  %1004 = vmatprep.subr.mxu0 0.0
  %1005 = vmatpush1.xpose.msra.mxu0 0.0
  %1006 = vmatprep.subr.mxu0 0.0
  %1007 = vmatpush1.xpose.msra.mxu0 0.0
  %1008 = vmatprep.subr.mxu0 0.0
  %1009 = vmatpush1.xpose.msra.mxu0 0.0
  %1010 = vmatprep.subr.mxu0 0.0
  %1011 = vmatpush1.xpose.msra.mxu0 0.0
  %1012 = vmatprep.subr.mxu0 0.0
  %1013 = vmatpush1.xpose.msra.mxu0 0.0
  %1014 = vmatprep.subr.mxu0 0.0
  %1015 = vmatpush1.xpose.msra.mxu0 0.0
  %1016 = vmatprep.subr.mxu0 0.0
  %1017 = vmatpush1.xpose.msra.mxu0 0.0
  %1018 = vmatprep.subr.mxu0 0.0
  %1019 = vmatpush1.xpose.msra.mxu0 0.0
  %1020 = vmatprep.subr.mxu0 0.0
  %1021 = vmatpush1.xpose.msra.mxu0 0.0
  %1022 = vmatprep.subr.mxu0 0.0
  %1023 = vmatpush1.xpose.msra.mxu0 0.0
  %1024 = vmatprep.subr.mxu0 0.0
  %1025 = vmatpush1.xpose.msra.mxu0 0.0
  %1026 = vmatprep.subr.mxu0 0.0
  %1027 = vmatpush1.xpose.msra.mxu0 0.0
  %1028 = vmatprep.subr.mxu0 0.0
  %1029 = vmatpush1.xpose.msra.mxu0 0.0
  %1030 = vmatprep.subr.mxu0 0.0
  %1031 = vmatpush1.xpose.msra.mxu0 0.0
  %1032 = vmatprep.subr.mxu0 0.0
  %1033 = vmatpush1.xpose.msra.mxu0 0.0
  %1034 = vmatprep.subr.mxu0 0.0
  %1035 = vmatpush1.xpose.msra.mxu0 0.0
  %1036 = vmatprep.subr.mxu0 0.0
  %1037 = vmatpush1.xpose.msra.mxu0 0.0
  %1038 = vmatprep.subr.mxu0 0.0
  %1039 = vmatpush1.xpose.msra.mxu0 0.0
  %1040 = vmatprep.subr.mxu0 0.0
  %1041 = vmatpush1.xpose.msra.mxu0 0.0
  %1042 = vmatprep.subr.mxu0 0.0
  %1043 = vmatpush1.xpose.msra.mxu0 0.0
  %1044 = vmatprep.subr.mxu0 0.0
  %1045 = vmatpush1.xpose.msra.mxu0 0.0
  %1046 = vmatprep.subr.mxu0 0.0
  %1047 = vmatpush1.xpose.msra.mxu0 0.0
  %1048 = vmatprep.subr.mxu0 0.0
  %1049 = vmatpush1.xpose.msra.mxu0 0.0
  %1050 = vmatprep.subr.mxu0 0.0
  %1051 = vmatpush1.xpose.msra.mxu0 0.0
  %1052 = vmatprep.subr.mxu0 0.0
  %1053 = vmatpush1.xpose.msra.mxu0 0.0
  %1054 = vmatprep.subr.mxu0 0.0
  %1055 = vmatpush1.xpose.msra.mxu0 0.0
  %1056 = vmatprep.subr.mxu0 0.0
  %1057 = vmatpush1.xpose.msra.mxu0 0.0
  %1058 = vmatprep.mubr.f32.mxu0 %v136
  %1059 = vmatmul.mubr.f32.gmra.mrb[0].mxu0 %v128
  %v1060 = vpop.f32.mrb[0].mxu0
  %v1061 = vadd.f32 %v991, %v1060
  %v1062 = vpop.f32.mrb[0].mxu0
  %1063 = vdwg.mxu0
  %1064 = vmatprep.subr.mxu0 %v269
  %1065 = vmatpush1.xpose.msra.mxu0 %v267
  %1066 = vmatprep.subr.mxu0 0.0
  %1067 = vmatpush1.xpose.msra.mxu0 0.0
  %1068 = vmatprep.subr.mxu0 0.0
  %1069 = vmatpush1.xpose.msra.mxu0 0.0
  %1070 = vmatprep.subr.mxu0 0.0
  %1071 = vmatpush1.xpose.msra.mxu0 0.0
  %1072 = vmatprep.subr.mxu0 0.0
  %1073 = vmatpush1.xpose.msra.mxu0 0.0
  %1074 = vmatprep.subr.mxu0 0.0
  %1075 = vmatpush1.xpose.msra.mxu0 0.0
  %1076 = vmatprep.subr.mxu0 0.0
  %1077 = vmatpush1.xpose.msra.mxu0 0.0
  %1078 = vmatprep.subr.mxu0 0.0
  %1079 = vmatpush1.xpose.msra.mxu0 0.0
  %1080 = vmatprep.subr.mxu0 0.0
  %1081 = vmatpush1.xpose.msra.mxu0 0.0
  %1082 = vmatprep.subr.mxu0 0.0
  %1083 = vmatpush1.xpose.msra.mxu0 0.0
  %1084 = vmatprep.subr.mxu0 0.0
  %1085 = vmatpush1.xpose.msra.mxu0 0.0
  %1086 = vmatprep.subr.mxu0 0.0
  %1087 = vmatpush1.xpose.msra.mxu0 0.0
  %1088 = vmatprep.subr.mxu0 0.0
  %1089 = vmatpush1.xpose.msra.mxu0 0.0
  %1090 = vmatprep.subr.mxu0 0.0
  %1091 = vmatpush1.xpose.msra.mxu0 0.0
  %1092 = vmatprep.subr.mxu0 0.0
  %1093 = vmatpush1.xpose.msra.mxu0 0.0
  %1094 = vmatprep.subr.mxu0 0.0
  %1095 = vmatpush1.xpose.msra.mxu0 0.0
  %1096 = vmatprep.subr.mxu0 0.0
  %1097 = vmatpush1.xpose.msra.mxu0 0.0
  %1098 = vmatprep.subr.mxu0 0.0
  %1099 = vmatpush1.xpose.msra.mxu0 0.0
  %1100 = vmatprep.subr.mxu0 0.0
  %1101 = vmatpush1.xpose.msra.mxu0 0.0
  %1102 = vmatprep.subr.mxu0 0.0
  %1103 = vmatpush1.xpose.msra.mxu0 0.0
  %1104 = vmatprep.subr.mxu0 0.0
  %1105 = vmatpush1.xpose.msra.mxu0 0.0
  %1106 = vmatprep.subr.mxu0 0.0
  %1107 = vmatpush1.xpose.msra.mxu0 0.0
  %1108 = vmatprep.subr.mxu0 0.0
  %1109 = vmatpush1.xpose.msra.mxu0 0.0
  %1110 = vmatprep.subr.mxu0 0.0
  %1111 = vmatpush1.xpose.msra.mxu0 0.0
  %1112 = vmatprep.subr.mxu0 0.0
  %1113 = vmatpush1.xpose.msra.mxu0 0.0
  %1114 = vmatprep.subr.mxu0 0.0
  %1115 = vmatpush1.xpose.msra.mxu0 0.0
  %1116 = vmatprep.subr.mxu0 0.0
  %1117 = vmatpush1.xpose.msra.mxu0 0.0
  %1118 = vmatprep.subr.mxu0 0.0
  %1119 = vmatpush1.xpose.msra.mxu0 0.0
  %1120 = vmatprep.subr.mxu0 0.0
  %1121 = vmatpush1.xpose.msra.mxu0 0.0
  %1122 = vmatprep.subr.mxu0 0.0
  %1123 = vmatpush1.xpose.msra.mxu0 0.0
  %1124 = vmatprep.subr.mxu0 0.0
  %1125 = vmatpush1.xpose.msra.mxu0 0.0
  %1126 = vmatprep.subr.mxu0 0.0
  %1127 = vmatpush1.xpose.msra.mxu0 0.0
  %1128 = vmatprep.mubr.f32.mxu0 %v137
  %1129 = vmatmul.mubr.f32.gmra.mrb[0].mxu0 %v135
  %v1130 = vpop.f32.mrb[0].mxu0
  %v1131 = vadd.f32 %v1061, %v1130
  %v1132 = vpop.f32.mrb[0].mxu0
  %1133 = vdwg.mxu0
  %v1134 = vadd.f32 %v17, %v1131
  %vm1135 = vcmask 9216
  %1136 = vst.msk [vmem:[%s2] sm:$0x3] %vm1135, %v1134
  // Predicated region
  $region14: #{mymodel_forward.1} parent=0 // pred_check
    _
  $region15: #{mymodel_forward.1} parent=0 // pred_check_branch
    %1138 = sbr.rel (0) target = $region17
  $region16: #{mymodel_forward.1} parent=0 // pred_region
    _
  $region17: #{mymodel_forward.1} parent=0 // pred_fallthru
    _
  // Predicated region
  $region18: #{mymodel_forward.1} parent=0 // pred_check
    _
  $region19: #{mymodel_forward.1} parent=0 // pred_check_branch
    %1140 = sbr.rel (0) target = $region21
  $region20: #{mymodel_forward.1} parent=0 // pred_region
    _
  $region21: #{mymodel_forward.1} parent=0 // pred_fallthru
    _

</llo_original>
